<compile_context>
chip_gen: v6e
topology: v6e:2x2x1
jax: 0.10.0
libtpu: 0.0.40
codegen_flags: <defaults>
</compile_context>

<pallas_src>
import functools

import jax
import jax.numpy as jnp
from jax.experimental import pallas as pl
from jax.experimental.pallas import tpu as pltpu

_LANE = 128


def _round_up(x, m):
    return ((x + m - 1) // m) * m


def _linear_kernel(x_ref, wt_ref, b_ref, o_ref, *, use_bf16_matmul):
    # x_ref:  (TB, K)      VMEM (already the x[:, k:] slice, done in the wrapper)
    # wt_ref: (K, N_pad)   VMEM, resident across grid steps
    # b_ref:  (1, N_pad)   VMEM, resident across grid steps
    # o_ref:  (TB, N_pad)  VMEM, lane-dense (N_pad % 128 == 0) -> unmasked stores
    x = x_ref[...]
    w = wt_ref[...]
    if use_bf16_matmul:
        x = x.astype(jnp.bfloat16)
        w = w.astype(jnp.bfloat16)
    y = jnp.dot(x, w, preferred_element_type=jnp.float32)   # f32 MXU accumulation
    y = y + b_ref[...].astype(jnp.float32)                   # bias add in f32
    o_ref[...] = y.astype(o_ref.dtype)


def prepare_linear_encoder_params(weight, bias):
    """One-time parameter prep, hoisted out of the per-call path.

    weight: (emb_dim - k, lin_in) PyTorch layout; bias: (emb_dim - k,).
    Returns (wt_padded (lin_in, N_pad), bias_padded (1, N_pad), n_out) with the
    output dim zero-padded to a multiple of 128 lanes.
    """
    n_out, k_in = weight.shape
    n_pad = _round_up(max(n_out, 1), _LANE)
    wt = jnp.zeros((k_in, n_pad), dtype=weight.dtype).at[:, :n_out].set(weight.T)
    b2 = jnp.zeros((1, n_pad), dtype=bias.dtype).at[0, :n_out].set(bias)
    return wt, b2, n_out


def _choose_block_rows(batch, k_in, n_pad, itemsize, vmem_budget_bytes=8 << 20):
    """Largest row block whose double-buffered x/out tiles fit a conservative
    VMEM budget (W/bias are resident and tiny). Budget is well under the 32 MiB
    scoped default and safe on v7x's 64 MiB physical VMEM."""
    per_row = 2 * (k_in + n_pad) * itemsize          # 2 buffers each for in + out tile
    sub = max(8, 32 // itemsize)                     # sublane packing: 8 f32 / 16 bf16
    tb = (vmem_budget_bytes // max(per_row, 1)) // sub * sub
    tb = min(tb, 1024)                               # diminishing returns past ~512-1024
    if tb >= batch:
        return batch                                 # full-B block is always legal
    return max(sub, tb)


def linear_encoder(x, wt_padded, b_padded, n_out, k, *, block_rows=None,
                   use_bf16_matmul=False):
    """x: (B, k + lin_in); wt_padded/b_padded/n_out from prepare_linear_encoder_params."""
    batch, feat = x.shape
    k_in, n_pad = wt_padded.shape
    assert feat - k == k_in, "x feature dim must equal k + linear in_features"

    # Passthrough columns never enter the kernel; the kernel input is already
    # the contiguous "rest" slab (no in-kernel lane-unaligned slice).
    x_rest = x[:, k:]

    if block_rows is None:
        block_rows = _choose_block_rows(batch, k_in, n_pad, x.dtype.itemsize)
    block_rows = min(block_rows, batch)
    if block_rows < batch:
        sub = max(8, 32 // x.dtype.itemsize)
        assert block_rows % sub == 0, "block_rows must be a multiple of sublane packing"

    grid = (pl.cdiv(batch, block_rows),)
    kernel = functools.partial(_linear_kernel, use_bf16_matmul=use_bf16_matmul)

    y_pad = pl.pallas_call(
        kernel,
        out_shape=jax.ShapeDtypeStruct((batch, n_pad), x.dtype),
        grid=grid,
        in_specs=[
            pl.BlockSpec((block_rows, k_in), lambda i: (i, 0)),
            pl.BlockSpec((k_in, n_pad), lambda i: (0, 0)),   # weight resident
            pl.BlockSpec((1, n_pad), lambda i: (0, 0)),      # bias resident
        ],
        out_specs=pl.BlockSpec((block_rows, n_pad), lambda i: (i, 0)),
        compiler_params=pltpu.CompilerParams(
            dimension_semantics=("parallel",),   # shard batch blocks across TCs (v7x)
        ),
    )(x_rest, wt_padded, b_padded)

    y = y_pad[:, :n_out]        # drop the lane-padding columns (all zeros + 0 bias)
    if k == 0:
        return y
    return jnp.concatenate([x[:, :k], y], axis=1)


def linear_encoder_ref(x, weight, bias, k):
    y = x[:, k:] @ weight.T + bias
    return jnp.concatenate([x[:, :k], y], axis=1)


if __name__ == "__main__":
    # LinearEncoder(in_dim=32, emb_dim=40, k=8): Linear(32 -> 32) on x[:, 8:],
    # so x carries k + in_dim = 40 features.
    B, in_dim, emb_dim, k = 256, 32, 40, 8
    feat = k + in_dim

    key = jax.random.PRNGKey(0)
    kx, kw, kb = jax.random.split(key, 3)

    x = jax.random.normal(kx, (B, feat), dtype=jnp.float32)
    bound = 1.0 / jnp.sqrt(jnp.float32(in_dim))   # nn.Linear-like uniform init
    weight = jax.random.uniform(
        kw, (emb_dim - k, in_dim), minval=-bound, maxval=bound, dtype=jnp.float32
    )
    bias = jax.random.uniform(
        kb, (emb_dim - k,), minval=-bound, maxval=bound, dtype=jnp.float32
    )

    # One-time parameter prep (transpose + lane-pad) outside the per-call path.
    wt, b2, n_out = prepare_linear_encoder_params(weight, bias)

    ref = linear_encoder_ref(x, weight, bias, k)

    # Auto block size (full-B block at these small shapes, grid=(1,)).
    out = jax.block_until_ready(linear_encoder(x, wt, b2, n_out, k))
    assert out.shape == (B, emb_dim)
    assert jnp.allclose(out, ref, atol=1e-5, rtol=1e-5)

    # Forced multi-block grid to exercise the batch-tiled double-buffer pipeline.
    out_tiled = jax.block_until_ready(
        linear_encoder(x, wt, b2, n_out, k, block_rows=64)
    )
    assert jnp.allclose(out_tiled, ref, atol=1e-5, rtol=1e-5)

    print("KERNEL_OK")
</pallas_src>

<mosaic_0001>
module attributes {stable_mosaic.version = 11 : i64} {
  func.func @_linear_kernel(%arg0: i32, %arg1: memref<256x32xf32, #tpu.memory_space<vmem>>, %arg2: memref<32x128xf32, #tpu.memory_space<vmem>>, %arg3: memref<1x128xf32, #tpu.memory_space<vmem>>, %arg4: memref<256x128xf32, #tpu.memory_space<vmem>>) attributes {dimension_semantics = [#tpu.dimension_semantics<parallel>], iteration_bounds = array<i64: 1>, scalar_prefetch = 0 : i64, scratch_operands = 0 : i64, tpu.core_type = #tpu.core_type<tc>, window_params = [{transform_indices = @transform_0, window_bounds = array<i64: 256, 32>}, {pipeline_mode = #tpu.pipeline_mode<synchronous>, transform_indices = @transform_1, window_bounds = array<i64: 32, 128>}, {pipeline_mode = #tpu.pipeline_mode<synchronous>, transform_indices = @transform_2, window_bounds = array<i64: 1, 128>}, {transform_indices = @transform_3, window_bounds = array<i64: 256, 128>}]} {
    %c0 = arith.constant 0 : index
    %c0_0 = arith.constant 0 : index
    %0 = vector.load %arg1[%c0, %c0_0] : memref<256x32xf32, #tpu.memory_space<vmem>>, vector<256x32xf32>
    %c0_1 = arith.constant 0 : index
    %c0_2 = arith.constant 0 : index
    %1 = vector.load %arg2[%c0_1, %c0_2] : memref<32x128xf32, #tpu.memory_space<vmem>>, vector<32x128xf32>
    %cst = arith.constant dense<0.000000e+00> : vector<256x128xf32>
    %2 = tpu.matmul %0, %1, %cst {dimension_numbers = #tpu.dot_dimension_numbers<[1], [0], [0], [1], [0, 0, 1, 1], [], []>} : vector<256x32xf32>, vector<32x128xf32>, vector<256x128xf32> -> vector<256x128xf32>
    %c0_3 = arith.constant 0 : index
    %c0_4 = arith.constant 0 : index
    %3 = vector.load %arg3[%c0_3, %c0_4] : memref<1x128xf32, #tpu.memory_space<vmem>>, vector<1x128xf32>
    %4 = vector.broadcast %3 : vector<1x128xf32> to vector<256x128xf32>
    %5 = arith.addf %2, %4 : vector<256x128xf32>
    %c0_5 = arith.constant 0 : index
    %c0_6 = arith.constant 0 : index
    %6 = vector.load %arg4[%c0_5, %c0_6] : memref<256x128xf32, #tpu.memory_space<vmem>>, vector<256x128xf32>
    tpu.vector_store %arg4[%c0_5, %c0_6], %5 {strides = array<i32>} : memref<256x128xf32, #tpu.memory_space<vmem>>, vector<256x128xf32>,
    return
  }
  func.func @transform_0(%arg0: i32) -> (i32, i32) {
    %c0_i32 = arith.constant 0 : i32
    %c0_i32_0 = arith.constant 0 : i32
    return %arg0, %c0_i32 : i32, i32
  }
  func.func @transform_1(%arg0: i32) -> (i32, i32) {
    %c0_i32 = arith.constant 0 : i32
    %c0_i32_0 = arith.constant 0 : i32
    %c0_i32_1 = arith.constant 0 : i32
    return %c0_i32, %c0_i32_0 : i32, i32
  }
  func.func @transform_2(%arg0: i32) -> (i32, i32) {
    %c0_i32 = arith.constant 0 : i32
    %c0_i32_0 = arith.constant 0 : i32
    %c0_i32_1 = arith.constant 0 : i32
    return %c0_i32, %c0_i32_0 : i32, i32
  }
  func.func @transform_3(%arg0: i32) -> (i32, i32) {
    %c0_i32 = arith.constant 0 : i32
    %c0_i32_0 = arith.constant 0 : i32
    return %arg0, %c0_i32 : i32, i32
  }
}

</mosaic_0001>

<llo_original>
// kernel: tpu_custom_call.1
$region0: #{tpu_custom_call.1}
  #allocation0 [shape = 'u32[]', space=smem, size = 0x4, offset = 0x4, fixed_abs, tag = 'smem constant byte address 0x4 - core index']
  #allocation1 [shape = 'u32[144,128]{1,0:T(1,128)}', space=vmem, size = 0x12000, scoped, tag = 'internal scratch']
  %s0 = inlined_call_operand.vmem [shape: f32[256,32], index: 0, kind: input, shape index: {}]
  %s1 = inlined_call_operand.vmem [shape: f32[32,128], index: 1, kind: input, shape index: {}]
  %s2 = inlined_call_operand.vmem [shape: f32[1,128], index: 2, kind: input, shape index: {}]
  %s3 = inlined_call_operand.hbm [shape: f32[256,128], index: 3, kind: output, shape index: {}]
  %s4 = sld [smem:[#allocation0]]
  $region22: #{tpu_custom_call.1} parent=0
    _
  %s6 = ssub.s32 1, %s4
  %s7 = scalar_select 0, %s6, %s4
  $region1: #{tpu_custom_call.1} parent=0
    #allocation2 [shape = 'u8[131072]{0}', space=vmem, size = 0x20000, scoped, tag = 'output window, operand 0, single buffered']
    #allocation3 [shape = 's32[1]{0}', space=sflag, size = 0x4, scoped, tag = 'scoped memory for tpu_custom_call.1']
    %8 = vsyncpa [#allocation3], 0
    // Predicated region
    $region2: #{tpu_custom_call.1} parent=1 // pred_check
      _
    $region3: #{tpu_custom_call.1} parent=1 // pred_check_branch
      %10 = sbr.rel (0) target = $region5
    $region4: #{tpu_custom_call.1} parent=1 // pred_region
      _
    $region5: #{tpu_custom_call.1} parent=1 // pred_fallthru
      _
    // Predicated region
    $region6: #{tpu_custom_call.1} parent=1 // pred_check
      _
    $region7: #{tpu_custom_call.1} parent=1 // pred_check_branch
      %12 = sbr.rel (0) target = $region9
    $region8: #{tpu_custom_call.1} parent=1 // pred_region
      _
    $region9: #{tpu_custom_call.1} parent=1 // pred_fallthru
      _
    // Predicated region
    $region10: #{tpu_custom_call.1} parent=1 // pred_check
      _
    $region11: #{tpu_custom_call.1} parent=1 // pred_check_branch
      %14 = sbr.rel (0) target = $region13
    $region12: #{tpu_custom_call.1} parent=1 // pred_region
      _
    $region13: #{tpu_custom_call.1} parent=1 // pred_fallthru
      _
    %v15 = vld [vmem:[%s0] sm:$0xff]
    %v16 = vld [vmem:[%s0 + $0x8] sm:$0xff]
    %v17 = vld [vmem:[%s0 + $0x10] sm:$0xff]
    %v18 = vld [vmem:[%s0 + $0x18] sm:$0xff]
    %v19 = vld [vmem:[%s0 + $0x20] sm:$0xff]
    %v20 = vld [vmem:[%s0 + $0x28] sm:$0xff]
    %v21 = vld [vmem:[%s0 + $0x30] sm:$0xff]
    %v22 = vld [vmem:[%s0 + $0x38] sm:$0xff]
    %v23 = vld [vmem:[%s0 + $0x40] sm:$0xff]
    %v24 = vld [vmem:[%s0 + $0x48] sm:$0xff]
    %v25 = vld [vmem:[%s0 + $0x50] sm:$0xff]
    %v26 = vld [vmem:[%s0 + $0x58] sm:$0xff]
    %v27 = vld [vmem:[%s0 + $0x60] sm:$0xff]
    %v28 = vld [vmem:[%s0 + $0x68] sm:$0xff]
    %v29 = vld [vmem:[%s0 + $0x70] sm:$0xff]
    %v30 = vld [vmem:[%s0 + $0x78] sm:$0xff]
    %v31 = vld [vmem:[%s0 + $0x80] sm:$0xff]
    %v32 = vld [vmem:[%s0 + $0x88] sm:$0xff]
    %v33 = vld [vmem:[%s0 + $0x90] sm:$0xff]
    %v34 = vld [vmem:[%s0 + $0x98] sm:$0xff]
    %v35 = vld [vmem:[%s0 + $0xa0] sm:$0xff]
    %v36 = vld [vmem:[%s0 + $0xa8] sm:$0xff]
    %v37 = vld [vmem:[%s0 + $0xb0] sm:$0xff]
    %v38 = vld [vmem:[%s0 + $0xb8] sm:$0xff]
    %v39 = vld [vmem:[%s0 + $0xc0] sm:$0xff]
    %v40 = vld [vmem:[%s0 + $0xc8] sm:$0xff]
    %v41 = vld [vmem:[%s0 + $0xd0] sm:$0xff]
    %v42 = vld [vmem:[%s0 + $0xd8] sm:$0xff]
    %v43 = vld [vmem:[%s0 + $0xe0] sm:$0xff]
    %v44 = vld [vmem:[%s0 + $0xe8] sm:$0xff]
    %v45 = vld [vmem:[%s0 + $0xf0] sm:$0xff]
    %v46 = vld [vmem:[%s0 + $0xf8] sm:$0xff]
    %v47 = vld [vmem:[%s1] sm:$0xff]
    %v48 = vld [vmem:[%s1 + $0x8] sm:$0xff]
    %v49 = vld [vmem:[%s1 + $0x10] sm:$0xff]
    %v50 = vld [vmem:[%s1 + $0x18] sm:$0xff]
    %v51 = vld [vmem:[%s2] sm:$0x1]
    %v53 = vlaneseq
    %v54 = vshrl.u32 %v53, 7
    %v55 = vsub.s32 0, %v54
    %v56 = vrot.slane %v51, %v55
    %vm58 = vcmask 261120
    %v60 = vsel %vm58, %v15, 0
    %v63 = vsel %vm58, %v16, 0
    %v66 = vsel %vm58, %v17, 0
    %v69 = vsel %vm58, %v18, 0
    %v72 = vsel %vm58, %v19, 0
    %v75 = vsel %vm58, %v20, 0
    %v78 = vsel %vm58, %v21, 0
    %v81 = vsel %vm58, %v22, 0
    %v84 = vsel %vm58, %v23, 0
    %v87 = vsel %vm58, %v24, 0
    %v90 = vsel %vm58, %v25, 0
    %v93 = vsel %vm58, %v26, 0
    %v96 = vsel %vm58, %v27, 0
    %v99 = vsel %vm58, %v28, 0
    %v102 = vsel %vm58, %v29, 0
    %v105 = vsel %vm58, %v30, 0
    %v108 = vsel %vm58, %v31, 0
    %v111 = vsel %vm58, %v32, 0
    %v114 = vsel %vm58, %v33, 0
    %v117 = vsel %vm58, %v34, 0
    %v120 = vsel %vm58, %v35, 0
    %v123 = vsel %vm58, %v36, 0
    %v126 = vsel %vm58, %v37, 0
    %v129 = vsel %vm58, %v38, 0
    %v132 = vsel %vm58, %v39, 0
    %v135 = vsel %vm58, %v40, 0
    %v138 = vsel %vm58, %v41, 0
    %v141 = vsel %vm58, %v42, 0
    %v144 = vsel %vm58, %v43, 0
    %v147 = vsel %vm58, %v44, 0
    %v150 = vsel %vm58, %v45, 0
    %v153 = vsel %vm58, %v46, 0
    %155 = vmatprep.subr.mxu0 0.0
    %156 = vmatpush1.msra.mxu0 0.0
    %157 = vmatprep.subr.mxu0 0.0
    %158 = vmatpush1.msra.mxu0 0.0
    %159 = vmatprep.subr.mxu0 0.0
    %160 = vmatpush1.msra.mxu0 0.0
    %161 = vmatprep.subr.mxu0 0.0
    %162 = vmatpush1.msra.mxu0 0.0
    %163 = vmatprep.subr.mxu0 0.0
    %164 = vmatpush1.msra.mxu0 0.0
    %165 = vmatprep.subr.mxu0 0.0
    %166 = vmatpush1.msra.mxu0 0.0
    %167 = vmatprep.subr.mxu0 0.0
    %168 = vmatpush1.msra.mxu0 0.0
    %169 = vmatprep.subr.mxu0 0.0
    %170 = vmatpush1.msra.mxu0 0.0
    %171 = vmatprep.subr.mxu0 0.0
    %172 = vmatpush1.msra.mxu0 0.0
    %173 = vmatprep.subr.mxu0 0.0
    %174 = vmatpush1.msra.mxu0 0.0
    %175 = vmatprep.subr.mxu0 0.0
    %176 = vmatpush1.msra.mxu0 0.0
    %177 = vmatprep.subr.mxu0 0.0
    %178 = vmatpush1.msra.mxu0 0.0
    %179 = vmatprep.subr.mxu0 0.0
    %180 = vmatpush1.msra.mxu0 %v50
    %181 = vmatprep.subr.mxu0 0.0
    %182 = vmatpush1.msra.mxu0 %v49
    %183 = vmatprep.subr.mxu0 0.0
    %184 = vmatpush1.msra.mxu0 %v48
    %185 = vmatprep.subr.mxu0 0.0
    %186 = vmatpush1.msra.mxu0 %v47
    %187 = vmatprep.subr.mxu0 0.0
    %188 = vmatpush2.msra.mxu0 0.0
    %189 = vmatprep.subr.mxu0 0.0
    %190 = vmatpush2.msra.mxu0 0.0
    %191 = vmatprep.subr.mxu0 0.0
    %192 = vmatpush2.msra.mxu0 0.0
    %193 = vmatprep.subr.mxu0 0.0
    %194 = vmatpush2.msra.mxu0 0.0
    %195 = vmatprep.subr.mxu0 0.0
    %196 = vmatpush2.msra.mxu0 0.0
    %197 = vmatprep.subr.mxu0 0.0
    %198 = vmatpush2.msra.mxu0 0.0
    %199 = vmatprep.subr.mxu0 0.0
    %200 = vmatpush2.msra.mxu0 0.0
    %201 = vmatprep.subr.mxu0 0.0
    %202 = vmatpush2.msra.mxu0 0.0
    %203 = vmatprep.subr.mxu0 0.0
    %204 = vmatpush2.msra.mxu0 0.0
    %205 = vmatprep.subr.mxu0 0.0
    %206 = vmatpush2.msra.mxu0 0.0
    %207 = vmatprep.subr.mxu0 0.0
    %208 = vmatpush2.msra.mxu0 0.0
    %209 = vmatprep.subr.mxu0 0.0
    %210 = vmatpush2.msra.mxu0 0.0
    %211 = vmatprep.subr.mxu0 0.0
    %212 = vmatpush2.msra.mxu0 0.0
    %213 = vmatprep.subr.mxu0 0.0
    %214 = vmatpush2.msra.mxu0 0.0
    %215 = vmatprep.subr.mxu0 0.0
    %216 = vmatpush2.msra.mxu0 0.0
    %217 = vmatprep.subr.mxu0 0.0
    %218 = vmatpush2.msra.mxu0 0.0
    %219 = vmatprep.mubr.f32.mxu0 0.0
    %220 = vmatmul.mubr.f32.gmra.mxu0 %v60
    %v221 = vpop.f32.mrf.mxu0
    %v222 = vadd.f32 %v56, %v221
    %v223 = vpop.f32.mrf.mxu0
    %224 = vmatprep.mubr.f32.mxu0 0.0
    %225 = vmatmul.mubr.f32.gmra.mxu0 %v63
    %v226 = vpop.f32.mrf.mxu0
    %v227 = vadd.f32 %v56, %v226
    %v228 = vpop.f32.mrf.mxu0
    %229 = vmatprep.mubr.f32.mxu0 0.0
    %230 = vmatmul.mubr.f32.gmra.mxu0 %v66
    %v231 = vpop.f32.mrf.mxu0
    %v232 = vadd.f32 %v56, %v231
    %v233 = vpop.f32.mrf.mxu0
    %234 = vmatprep.mubr.f32.mxu0 0.0
    %235 = vmatmul.mubr.f32.gmra.mxu0 %v69
    %v236 = vpop.f32.mrf.mxu0
    %v237 = vadd.f32 %v56, %v236
    %v238 = vpop.f32.mrf.mxu0
    %239 = vmatprep.mubr.f32.mxu0 0.0
    %240 = vmatmul.mubr.f32.gmra.mxu0 %v72
    %v241 = vpop.f32.mrf.mxu0
    %v242 = vadd.f32 %v56, %v241
    %v243 = vpop.f32.mrf.mxu0
    %244 = vmatprep.mubr.f32.mxu0 0.0
    %245 = vmatmul.mubr.f32.gmra.mxu0 %v75
    %v246 = vpop.f32.mrf.mxu0
    %v247 = vadd.f32 %v56, %v246
    %v248 = vpop.f32.mrf.mxu0
    %249 = vmatprep.mubr.f32.mxu0 0.0
    %250 = vmatmul.mubr.f32.gmra.mxu0 %v78
    %v251 = vpop.f32.mrf.mxu0
    %v252 = vadd.f32 %v56, %v251
    %v253 = vpop.f32.mrf.mxu0
    %254 = vmatprep.mubr.f32.mxu0 0.0
    %255 = vmatmul.mubr.f32.gmra.mxu0 %v81
    %v256 = vpop.f32.mrf.mxu0
    %v257 = vadd.f32 %v56, %v256
    %v258 = vpop.f32.mrf.mxu0
    %259 = vmatprep.mubr.f32.mxu0 0.0
    %260 = vmatmul.mubr.f32.gmra.mxu0 %v84
    %v261 = vpop.f32.mrf.mxu0
    %v262 = vadd.f32 %v56, %v261
    %v263 = vpop.f32.mrf.mxu0
    %264 = vmatprep.mubr.f32.mxu0 0.0
    %265 = vmatmul.mubr.f32.gmra.mxu0 %v87
    %v266 = vpop.f32.mrf.mxu0
    %v267 = vadd.f32 %v56, %v266
    %v268 = vpop.f32.mrf.mxu0
    %269 = vmatprep.mubr.f32.mxu0 0.0
    %270 = vmatmul.mubr.f32.gmra.mxu0 %v90
    %v271 = vpop.f32.mrf.mxu0
    %v272 = vadd.f32 %v56, %v271
    %v273 = vpop.f32.mrf.mxu0
    %274 = vmatprep.mubr.f32.mxu0 0.0
    %275 = vmatmul.mubr.f32.gmra.mxu0 %v93
    %v276 = vpop.f32.mrf.mxu0
    %v277 = vadd.f32 %v56, %v276
    %v278 = vpop.f32.mrf.mxu0
    %279 = vmatprep.mubr.f32.mxu0 0.0
    %280 = vmatmul.mubr.f32.gmra.mxu0 %v96
    %v281 = vpop.f32.mrf.mxu0
    %v282 = vadd.f32 %v56, %v281
    %v283 = vpop.f32.mrf.mxu0
    %284 = vmatprep.mubr.f32.mxu0 0.0
    %285 = vmatmul.mubr.f32.gmra.mxu0 %v99
    %v286 = vpop.f32.mrf.mxu0
    %v287 = vadd.f32 %v56, %v286
    %v288 = vpop.f32.mrf.mxu0
    %289 = vmatprep.mubr.f32.mxu0 0.0
    %290 = vmatmul.mubr.f32.gmra.mxu0 %v102
    %v291 = vpop.f32.mrf.mxu0
    %v292 = vadd.f32 %v56, %v291
    %v293 = vpop.f32.mrf.mxu0
    %294 = vmatprep.mubr.f32.mxu0 0.0
    %295 = vmatmul.mubr.f32.gmra.mxu0 %v105
    %v296 = vpop.f32.mrf.mxu0
    %v297 = vadd.f32 %v56, %v296
    %v298 = vpop.f32.mrf.mxu0
    %299 = vmatprep.mubr.f32.mxu0 0.0
    %300 = vmatmul.mubr.f32.gmra.mxu0 %v108
    %v301 = vpop.f32.mrf.mxu0
    %v302 = vadd.f32 %v56, %v301
    %v303 = vpop.f32.mrf.mxu0
    %304 = vmatprep.mubr.f32.mxu0 0.0
    %305 = vmatmul.mubr.f32.gmra.mxu0 %v111
    %v306 = vpop.f32.mrf.mxu0
    %v307 = vadd.f32 %v56, %v306
    %v308 = vpop.f32.mrf.mxu0
    %309 = vmatprep.mubr.f32.mxu0 0.0
    %310 = vmatmul.mubr.f32.gmra.mxu0 %v114
    %v311 = vpop.f32.mrf.mxu0
    %v312 = vadd.f32 %v56, %v311
    %v313 = vpop.f32.mrf.mxu0
    %314 = vmatprep.mubr.f32.mxu0 0.0
    %315 = vmatmul.mubr.f32.gmra.mxu0 %v117
    %v316 = vpop.f32.mrf.mxu0
    %v317 = vadd.f32 %v56, %v316
    %v318 = vpop.f32.mrf.mxu0
    %319 = vmatprep.mubr.f32.mxu0 0.0
    %320 = vmatmul.mubr.f32.gmra.mxu0 %v120
    %v321 = vpop.f32.mrf.mxu0
    %v322 = vadd.f32 %v56, %v321
    %v323 = vpop.f32.mrf.mxu0
    %324 = vmatprep.mubr.f32.mxu0 0.0
    %325 = vmatmul.mubr.f32.gmra.mxu0 %v123
    %v326 = vpop.f32.mrf.mxu0
    %v327 = vadd.f32 %v56, %v326
    %v328 = vpop.f32.mrf.mxu0
    %329 = vmatprep.mubr.f32.mxu0 0.0
    %330 = vmatmul.mubr.f32.gmra.mxu0 %v126
    %v331 = vpop.f32.mrf.mxu0
    %v332 = vadd.f32 %v56, %v331
    %v333 = vpop.f32.mrf.mxu0
    %334 = vmatprep.mubr.f32.mxu0 0.0
    %335 = vmatmul.mubr.f32.gmra.mxu0 %v129
    %v336 = vpop.f32.mrf.mxu0
    %v337 = vadd.f32 %v56, %v336
    %v338 = vpop.f32.mrf.mxu0
    %339 = vmatprep.mubr.f32.mxu0 0.0
    %340 = vmatmul.mubr.f32.gmra.mxu0 %v132
    %v341 = vpop.f32.mrf.mxu0
    %v342 = vadd.f32 %v56, %v341
    %v343 = vpop.f32.mrf.mxu0
    %344 = vmatprep.mubr.f32.mxu0 0.0
    %345 = vmatmul.mubr.f32.gmra.mxu0 %v135
    %v346 = vpop.f32.mrf.mxu0
    %v347 = vadd.f32 %v56, %v346
    %v348 = vpop.f32.mrf.mxu0
    %349 = vmatprep.mubr.f32.mxu0 0.0
    %350 = vmatmul.mubr.f32.gmra.mxu0 %v138
    %v351 = vpop.f32.mrf.mxu0
    %v352 = vadd.f32 %v56, %v351
    %v353 = vpop.f32.mrf.mxu0
    %354 = vmatprep.mubr.f32.mxu0 0.0
    %355 = vmatmul.mubr.f32.gmra.mxu0 %v141
    %v356 = vpop.f32.mrf.mxu0
    %v357 = vadd.f32 %v56, %v356
    %v358 = vpop.f32.mrf.mxu0
    %359 = vmatprep.mubr.f32.mxu0 0.0
    %360 = vmatmul.mubr.f32.gmra.mxu0 %v144
    %v361 = vpop.f32.mrf.mxu0
    %v362 = vadd.f32 %v56, %v361
    %v363 = vpop.f32.mrf.mxu0
    %364 = vmatprep.mubr.f32.mxu0 0.0
    %365 = vmatmul.mubr.f32.gmra.mxu0 %v147
    %v366 = vpop.f32.mrf.mxu0
    %v367 = vadd.f32 %v56, %v366
    %v368 = vpop.f32.mrf.mxu0
    %369 = vmatprep.mubr.f32.mxu0 0.0
    %370 = vmatmul.mubr.f32.gmra.mxu0 %v150
    %v371 = vpop.f32.mrf.mxu0
    %v372 = vadd.f32 %v56, %v371
    %v373 = vpop.f32.mrf.mxu0
    %374 = vmatprep.mubr.f32.mxu0 0.0
    %375 = vmatmul.mubr.f32.gmra.mxu0 %v153
    %v376 = vpop.f32.mrf.mxu0
    %v377 = vadd.f32 %v56, %v376
    %v378 = vpop.f32.mrf.mxu0
    %379 = vdwg.mxu0
    %380 = vst [vmem:[#allocation2] sm:$0xff] %v222
    %381 = vst [vmem:[#allocation2 + $0x8] sm:$0xff] %v227
    %382 = vst [vmem:[#allocation2 + $0x10] sm:$0xff] %v232
    %383 = vst [vmem:[#allocation2 + $0x18] sm:$0xff] %v237
    %384 = vst [vmem:[#allocation2 + $0x20] sm:$0xff] %v242
    %385 = vst [vmem:[#allocation2 + $0x28] sm:$0xff] %v247
    %386 = vst [vmem:[#allocation2 + $0x30] sm:$0xff] %v252
    %387 = vst [vmem:[#allocation2 + $0x38] sm:$0xff] %v257
    %388 = vst [vmem:[#allocation2 + $0x40] sm:$0xff] %v262
    %389 = vst [vmem:[#allocation2 + $0x48] sm:$0xff] %v267
    %390 = vst [vmem:[#allocation2 + $0x50] sm:$0xff] %v272
    %391 = vst [vmem:[#allocation2 + $0x58] sm:$0xff] %v277
    %392 = vst [vmem:[#allocation2 + $0x60] sm:$0xff] %v282
    %393 = vst [vmem:[#allocation2 + $0x68] sm:$0xff] %v287
    %394 = vst [vmem:[#allocation2 + $0x70] sm:$0xff] %v292
    %395 = vst [vmem:[#allocation2 + $0x78] sm:$0xff] %v297
    %396 = vst [vmem:[#allocation2 + $0x80] sm:$0xff] %v302
    %397 = vst [vmem:[#allocation2 + $0x88] sm:$0xff] %v307
    %398 = vst [vmem:[#allocation2 + $0x90] sm:$0xff] %v312
    %399 = vst [vmem:[#allocation2 + $0x98] sm:$0xff] %v317
    %400 = vst [vmem:[#allocation2 + $0xa0] sm:$0xff] %v322
    %401 = vst [vmem:[#allocation2 + $0xa8] sm:$0xff] %v327
    %402 = vst [vmem:[#allocation2 + $0xb0] sm:$0xff] %v332
    %403 = vst [vmem:[#allocation2 + $0xb8] sm:$0xff] %v337
    %404 = vst [vmem:[#allocation2 + $0xc0] sm:$0xff] %v342
    %405 = vst [vmem:[#allocation2 + $0xc8] sm:$0xff] %v347
    %406 = vst [vmem:[#allocation2 + $0xd0] sm:$0xff] %v352
    %407 = vst [vmem:[#allocation2 + $0xd8] sm:$0xff] %v357
    %408 = vst [vmem:[#allocation2 + $0xe0] sm:$0xff] %v362
    %409 = vst [vmem:[#allocation2 + $0xe8] sm:$0xff] %v367
    %410 = vst [vmem:[#allocation2 + $0xf0] sm:$0xff] %v372
    %411 = vst [vmem:[#allocation2 + $0xf8] sm:$0xff] %v377
    // Predicated region
    $region14: #{tpu_custom_call.1} parent=1 // pred_check
      _
    $region15: #{tpu_custom_call.1} parent=1 // pred_check_branch
      %413 = sbr.rel (0) target = $region17
    $region16: #{tpu_custom_call.1} parent=1 // pred_region
      %s415 = ssub.s32 4096, 4096
      %416 = vsyncadd [#allocation3], %s415
      %s417 = sshll.u32 [#allocation2], 4
      %s418 = int_to_ptr.vmem [resolvable:$true] %s417
      %423 = dma.vmem_to_hbm [thread:$0]  %s418, 4096, %s3, [#allocation3], 128, 128, 8
    $region17: #{tpu_custom_call.1} parent=1 // pred_fallthru
      _
    // Predicated region
    $region18: #{tpu_custom_call.1} parent=1 // pred_check
      _
    $region19: #{tpu_custom_call.1} parent=1 // pred_check_branch
      %425 = sbr.rel (0) target = $region21
    $region20: #{tpu_custom_call.1} parent=1 // pred_region
      %426 = dma.done [#allocation3], 4096
    $region21: #{tpu_custom_call.1} parent=1 // pred_fallthru
      _
    %427 = vsyncpa [#allocation3], 1

</llo_original>
